<compile_context>
chip_gen: v7x
topology: tpu7x:2x2x1
jax: 0.10.0
libtpu: 0.0.40
codegen_flags: <defaults>
</compile_context>

<pallas_src>
import math

import jax
import jax.numpy as jnp
from jax.experimental import pallas as pl
from jax.experimental.pallas import tpu as pltpu


def _round_up(x: int, m: int) -> int:
    return -(-x // m) * m


def build_positional_encoding(d_model: int, max_len: int) -> jnp.ndarray:
    """Deterministic buffer identical to the PyTorch __init__ (shape (maxLen, dModel))."""
    assert d_model % 2 == 0, "d_model must be even (matches PyTorch buffer layout)"
    position = jnp.arange(0, max_len, dtype=jnp.float32)[:, None]            # (maxLen, 1)
    denominator = jnp.exp(
        jnp.arange(0, d_model, 2, dtype=jnp.float32) * (math.log(10000.0) / d_model)
    )                                                                         # (d_model/2,)
    pe = jnp.zeros((max_len, d_model), dtype=jnp.float32)
    pe = pe.at[:, 0::2].set(jnp.sin(position / denominator))
    pe = pe.at[:, 1::2].set(jnp.cos(position / denominator))
    return pe  # reshaped to (maxLen, 1, dModel) inside the wrapper (free view)


def _pos_enc_kernel(x_ref, pe_ref, o_ref):
    # x_ref/o_ref: (tile_t, B, D) block; pe_ref: (tile_t, 1, D) block.
    # Layouts agree, so the batch broadcast is a native size-1-sublane broadcast.
    o_ref[...] = (x_ref[...] + pe_ref[...]).astype(o_ref.dtype)


def _choose_tile_t(T: int, B: int, D: int, x_bytes: int) -> int:
    """Largest T-tile (multiple of 8) with double-buffered VMEM use <= ~24 MiB."""
    sub_pack = 8 * max(1, 4 // x_bytes)         # 8 (f32), 16 (bf16), 32 (int8)
    b_pad = _round_up(B, sub_pack)              # sublane padding of the batch axis
    d_pad = _round_up(D, 128)                   # lane padding of the feature axis
    # Per T-row, double-buffered:
    #   x block + out block : 2 buffers * 2 arrays * b_pad * d_pad * x_bytes
    #   pe block (size-1 sublane dim pads to the 32-byte sublane granule)
    per_row = 4 * b_pad * d_pad * x_bytes + 2 * 32 * d_pad
    budget = 24 * 1024 * 1024
    return max(8, (budget // per_row) // 8 * 8)


def positional_encoding_forward(x: jnp.ndarray, pe: jnp.ndarray) -> jnp.ndarray:
    """x: (T, B, D); pe: (maxLen, D) float32 with maxLen >= T."""
    T, B, D = x.shape
    max_len = pe.shape[0]
    assert max_len >= T and pe.shape[1] == D

    x_bytes = jnp.dtype(x.dtype).itemsize
    tile_t = _choose_tile_t(T, B, D, x_bytes)
    # Span at least 2 parallel tiles so v7x's two TensorCores both get work
    # (harmless on single-TC v5e/v6e); never exceed the full T extent.
    tile_t = min(tile_t, _round_up(pl.cdiv(T, 2), 8))
    tile_t = min(tile_t, T)

    pe3 = pe.reshape(max_len, 1, D)             # free view; matches x's block layout

    cost = pl.CostEstimate(
        flops=T * B * D,
        transcendentals=0,
        bytes_accessed=2 * T * B * D * x_bytes + T * D * jnp.dtype(pe.dtype).itemsize,
    )

    return pl.pallas_call(
        _pos_enc_kernel,
        out_shape=jax.ShapeDtypeStruct((T, B, D), x.dtype),
        grid_spec=pl.GridSpec(
            grid=(pl.cdiv(T, tile_t),),
            in_specs=[
                pl.BlockSpec((tile_t, B, D), lambda t: (t, 0, 0)),
                pl.BlockSpec((tile_t, 1, D), lambda t: (t, 0, 0)),
            ],
            out_specs=pl.BlockSpec((tile_t, B, D), lambda t: (t, 0, 0)),
        ),
        input_output_aliases={0: 0},            # output reuses x's HBM buffer
        cost_estimate=cost,
        compiler_params=pltpu.CompilerParams(
            dimension_semantics=("parallel",),
            vmem_limit_bytes=32 * 1024 * 1024,  # safe per-TC ceiling on v7x (64 MiB VMEM)
        ),
    )(x, pe3)


if __name__ == "__main__":
    d_model = 128   # lane-dense last dim (multiple of 128) -> unmasked stores
    max_len = 16
    T, B = 12, 2    # T=12 exercises the 2-tile grid and a masked partial last block

    key = jax.random.PRNGKey(0)
    x = jax.random.normal(key, (T, B, d_model), dtype=jnp.float32)

    pe = build_positional_encoding(d_model, max_len)

    # Reference computed first (same math as PyTorch forward), before the
    # potentially-aliasing kernel call.
    ref = x + pe[:T][:, None, :]

    out = positional_encoding_forward(x, pe)
    out = jax.block_until_ready(out)

    assert out.shape == (T, B, d_model)
    assert jnp.allclose(out, ref, atol=1e-6), "mismatch vs reference"

    print("KERNEL_OK")
</pallas_src>

<mosaic_0001>
module attributes {stable_mosaic.version = 11 : i64} {
  func.func @_pos_enc_kernel(%arg0: i32, %arg1: memref<8x2x128xf32, #tpu.memory_space<vmem>>, %arg2: memref<8x1x128xf32, #tpu.memory_space<vmem>>, %arg3: memref<8x2x128xf32, #tpu.memory_space<vmem>>) attributes {dimension_semantics = [#tpu.dimension_semantics<parallel>], iteration_bounds = array<i64: 2>, scalar_prefetch = 0 : i64, scratch_operands = 0 : i64, tpu.core_type = #tpu.core_type<tc>, window_params = [{transform_indices = @transform_0, window_bounds = array<i64: 8, 2, 128>}, {transform_indices = @transform_1, window_bounds = array<i64: 8, 1, 128>}, {transform_indices = @transform_2, window_bounds = array<i64: 8, 2, 128>}]} {
    %c0 = arith.constant 0 : index
    %c0_0 = arith.constant 0 : index
    %c0_1 = arith.constant 0 : index
    %0 = vector.load %arg1[%c0, %c0_0, %c0_1] : memref<8x2x128xf32, #tpu.memory_space<vmem>>, vector<8x2x128xf32>
    %c0_2 = arith.constant 0 : index
    %c0_3 = arith.constant 0 : index
    %c0_4 = arith.constant 0 : index
    %1 = vector.load %arg2[%c0_2, %c0_3, %c0_4] : memref<8x1x128xf32, #tpu.memory_space<vmem>>, vector<8x1x128xf32>
    %2 = vector.broadcast %1 : vector<8x1x128xf32> to vector<8x2x128xf32>
    %3 = arith.addf %0, %2 : vector<8x2x128xf32>
    %c0_5 = arith.constant 0 : index
    %c0_6 = arith.constant 0 : index
    %c0_7 = arith.constant 0 : index
    %4 = vector.load %arg3[%c0_5, %c0_6, %c0_7] : memref<8x2x128xf32, #tpu.memory_space<vmem>>, vector<8x2x128xf32>
    tpu.vector_store %arg3[%c0_5, %c0_6, %c0_7], %3 {strides = array<i32>} : memref<8x2x128xf32, #tpu.memory_space<vmem>>, vector<8x2x128xf32>,
    return
  }
  func.func @transform_0(%arg0: i32) -> (i32, i32, i32) {
    %c0_i32 = arith.constant 0 : i32
    %c0_i32_0 = arith.constant 0 : i32
    %c0_i32_1 = arith.constant 0 : i32
    return %arg0, %c0_i32, %c0_i32_0 : i32, i32, i32
  }
  func.func @transform_1(%arg0: i32) -> (i32, i32, i32) {
    %c0_i32 = arith.constant 0 : i32
    %c0_i32_0 = arith.constant 0 : i32
    %c0_i32_1 = arith.constant 0 : i32
    return %arg0, %c0_i32, %c0_i32_0 : i32, i32, i32
  }
  func.func @transform_2(%arg0: i32) -> (i32, i32, i32) {
    %c0_i32 = arith.constant 0 : i32
    %c0_i32_0 = arith.constant 0 : i32
    %c0_i32_1 = arith.constant 0 : i32
    return %arg0, %c0_i32, %c0_i32_0 : i32, i32, i32
  }
}

</mosaic_0001>

<llo_original>
// kernel: tpu_custom_call.1
$region0: #{tpu_custom_call.1}
  #allocation0 [shape = 'u32[]', space=smem, size = 0x4, offset = 0x4, fixed_abs, tag = 'smem constant byte address 0x4 - core index']
  #allocation1 [shape = 'u32[144,128]{1,0:T(1,128)}', space=vmem, size = 0x12000, scoped, tag = 'internal scratch']
  %s0 = inlined_call_operand.hbm [shape: f32[12,2,128], index: 0, kind: input, shape index: {}, may-alias: {0,2}]
  %s1 = inlined_call_operand.vmem [shape: f32[16,1,128], index: 1, kind: input, shape index: {}]
  %s2 = inlined_call_operand.hbm [shape: f32[12,2,128], index: 2, kind: output, shape index: {}, may-alias: {0,2}]
  %s3 = sld [smem:[#allocation0]]
  $region45: #{tpu_custom_call.1} parent=0
    _
  %s5 = ssub.s32 1, %s3
  %s6 = scalar_select 0, %s5, %s3
  $region1: #{tpu_custom_call.1} parent=0
    #allocation2 [shape = 'u8[16384]{0}', space=vmem, size = 0x4000, scoped, tag = 'input window, operand 0']
    #allocation3 [shape = 's32[2]{0}', space=sflag, size = 0x8, scoped, tag = 'scoped memory for tpu_custom_call.1']
    #allocation4 [shape = 's32[2]{0}', space=sflag, size = 0x8, scoped, tag = 'scoped memory for tpu_custom_call.1']
    #allocation5 [shape = 'u8[16384]{0}', space=vmem, size = 0x4000, scoped, tag = 'output window, operand 0']
    %7 = vsyncpa [#allocation3], 0
    %s8 = scalar_lea.sflag [#allocation3], 1
    %9 = vsyncpa %s8, 0
    %10 = vsyncpa [#allocation4], 0
    %s11 = scalar_lea.sflag [#allocation4], 1
    %12 = vsyncpa %s11, 0
    loop: start=0, step=1, limit=4
    $region2: #{tpu_custom_call.1} parent=1 // loop_pre_header
      _
    $region3: #{tpu_custom_call.1} parent=1 // loop_header
      %s14 = sphi 0, %s18
      %p15 = scmp.ge.s32.totalorder %s14, 4
      %s24 = sphi 0, %s26
      %s27 = sphi 0, %s24
      %s28 = sphi 0, %s27
      %s44 = sphi 0, %s28
      %s50 = sphi 0, %s52
      %s53 = sphi 0, %s50
      %s54 = sphi 0, %s53
      %s70 = sphi 0, %s54
      %s76 = sphi 0, %s78
      %s79 = sphi 0, %s76
      %s80 = sphi 0, %s79
      %s96 = sphi 0, %s80
    $region4: #{tpu_custom_call.1} parent=1 // loop_header_branch
      %17 = sbr.rel (%p15) target = $region8
    $region5: #{tpu_custom_call.1} parent=1 // loop_body
      %s19 = ssub.s32 %s14, 1
      %s20 = ssub.s32 %s14, 2
      %s21 = sadd.s32 %s14, 1
      %s22 = ssub.s32 %s14, %s21
      %p23 = scmp.eq.s32.totalorder %s22, 0
      %s25 = sadd.s32 %s24, 1
      %s26 = scalar_select %p23, %s24, %s25
      %p29 = pneg %p23
      %p30 = scmp.eq.s32.totalorder %s14, 1
      %p31 = por %p29, %p30
      %p32 = scmp.ne.s32.totalorder %s24, %s27
      %p33 = scmp.eq.s32.totalorder %s14, 0
      %p34 = por %p32, %p33
      %p35 = scmp.ne.s32.totalorder %s24, %s27
      %p36 = scmp.eq.s32.totalorder %s19, 1
      %p37 = por %p35, %p36
      %p38 = scmp.ne.s32.totalorder %s27, %s28
      %p39 = scmp.eq.s32.totalorder %s19, 0
      %p40 = por %p38, %p39
      %p41 = scmp.ne.s32.totalorder %s27, %s28
      %p42 = scmp.eq.s32.totalorder %s20, 1
      %p43 = por %p41, %p42
      %p45 = scmp.ne.s32.totalorder %s28, %s44
      %p46 = scmp.eq.s32.totalorder %s20, 0
      %p47 = por %p45, %p46
      %s48 = ssub.s32 %s14, %s21
      %p49 = scmp.eq.s32.totalorder %s48, 0
      %s51 = sadd.s32 %s50, 1
      %s52 = scalar_select %p49, %s50, %s51
      %p55 = pneg %p49
      %p56 = scmp.eq.s32.totalorder %s14, 1
      %p57 = por %p55, %p56
      %p58 = scmp.ne.s32.totalorder %s50, %s53
      %p59 = scmp.eq.s32.totalorder %s14, 0
      %p60 = por %p58, %p59
      %p61 = scmp.ne.s32.totalorder %s50, %s53
      %p62 = scmp.eq.s32.totalorder %s19, 1
      %p63 = por %p61, %p62
      %p64 = scmp.ne.s32.totalorder %s53, %s54
      %p65 = scmp.eq.s32.totalorder %s19, 0
      %p66 = por %p64, %p65
      %p67 = scmp.ne.s32.totalorder %s53, %s54
      %p68 = scmp.eq.s32.totalorder %s20, 1
      %p69 = por %p67, %p68
      %p71 = scmp.ne.s32.totalorder %s54, %s70
      %p72 = scmp.eq.s32.totalorder %s20, 0
      %p73 = por %p71, %p72
      %s74 = ssub.s32 %s14, %s21
      %p75 = scmp.eq.s32.totalorder %s74, 0
      %s77 = sadd.s32 %s76, 1
      %s78 = scalar_select %p75, %s76, %s77
      %p81 = pneg %p75
      %p82 = scmp.eq.s32.totalorder %s14, 1
      %p83 = por %p81, %p82
      %p84 = scmp.ne.s32.totalorder %s76, %s79
      %p85 = scmp.eq.s32.totalorder %s14, 0
      %p86 = por %p84, %p85
      %p87 = scmp.ne.s32.totalorder %s76, %s79
      %p88 = scmp.eq.s32.totalorder %s19, 1
      %p89 = por %p87, %p88
      %p90 = scmp.ne.s32.totalorder %s79, %s80
      %p91 = scmp.eq.s32.totalorder %s19, 0
      %p92 = por %p90, %p91
      %p93 = scmp.ne.s32.totalorder %s79, %s80
      %p94 = scmp.eq.s32.totalorder %s20, 1
      %p95 = por %p93, %p94
      %p97 = scmp.ne.s32.totalorder %s80, %s96
      %p98 = scmp.eq.s32.totalorder %s20, 0
      %p99 = por %p97, %p98
      %p100 = scmp.le.s32.totalorder 1, %s14
      %p101 = scmp.lt.s32.totalorder %s14, 3
      %p102 = pnand %p100, %p101
      %p103 = pneg %p102
      // Predicated region
      $region9: #{tpu_custom_call.1} parent=5 // pred_check
        _
      $region10: #{tpu_custom_call.1} parent=5 // pred_check_branch
        %105 = sbr.rel (%p102) target = $region12
      $region11: #{tpu_custom_call.1} parent=5 // pred_region
        %s106 = ssub.s32 %s14, 1
      $region12: #{tpu_custom_call.1} parent=5 // pred_fallthru
        _
      %p107 = scmp.lt.s32.totalorder %s14, 2
      // Predicated region
      $region13: #{tpu_custom_call.1} parent=5 // pred_check
        %p108 = pneg %p107
      $region14: #{tpu_custom_call.1} parent=5 // pred_check_branch
        %110 = sbr.rel (%p108) target = $region16
      $region15: #{tpu_custom_call.1} parent=5 // pred_region
        // Predicated region
        $region17: #{tpu_custom_call.1} parent=15 // pred_check
          %p111 = pneg %p34
        $region18: #{tpu_custom_call.1} parent=15 // pred_check_branch
          %113 = sbr.rel (%p111) target = $region20
        $region19: #{tpu_custom_call.1} parent=15 // pred_region
          %s114 = sand.u32 %s24, 1
          %s115 = scalar_lea.sflag [#allocation3], %s114
          %s116 = sand.u32 %s24, 1
          %s117 = smul.addr %s116, 16
          %s118 = scalar_lea.vmem [#allocation2], %s117
          %s119 = smul.u32 8, %s14
          %s120 = ssub.s32 12, %s119
          %p121 = scmp.lt.s32.totalorder %s120, 8
          %s122 = scalar_select %p121, %s120, 8
          %s123 = smul.u32 32, %s122
          %s125 = ssub.s32 256, %s123
          %126 = vsyncadd %s115, %s125
          %p127 = scmp.ne.s32.totalorder 0, %s123
          %s128 = smul.addr %s119, 32
          %s129 = scalar_lea.hbm %s0, %s128
          %s130 = smul.u32 2, %s122
          %s131 = sshll.u32 %s118, 4
          %s132 = int_to_ptr.vmem [resolvable:$true] %s131
          %s133 = sshll.u32 %s130, 4
          %137 = dma.hbm_to_vmem [thread:$0]  (%p127), %s129, %s133, %s132, %s115, 32, 32, 2
        $region20: #{tpu_custom_call.1} parent=15 // pred_fallthru
          _
        // Predicated region
        $region21: #{tpu_custom_call.1} parent=15 // pred_check
          %p138 = pneg %p60
        $region22: #{tpu_custom_call.1} parent=15 // pred_check_branch
          %140 = sbr.rel (%p138) target = $region24
        $region23: #{tpu_custom_call.1} parent=15 // pred_region
          %s141 = smul.u32 8, %s14
          %p142 = scmp.lt.s32.totalorder %s141, 15
          %s143 = scalar_select %p142, %s141, 15
          %s144 = scalar_lea.vmem %s1, %s143
          %s145 = smul.u32 8, %s14
        $region24: #{tpu_custom_call.1} parent=15 // pred_fallthru
          _
      $region16: #{tpu_custom_call.1} parent=5 // pred_fallthru
        _
      %p146 = scmp.le.s32.totalorder 1, %s14
      %p147 = scmp.lt.s32.totalorder %s14, 3
      %p148 = pnand %p146, %p147
      %p149 = pneg %p148
      // Predicated region
      $region25: #{tpu_custom_call.1} parent=5 // pred_check
        _
      $region26: #{tpu_custom_call.1} parent=5 // pred_check_branch
        %151 = sbr.rel (%p148) target = $region28
      $region27: #{tpu_custom_call.1} parent=5 // pred_region
        %s152 = ssub.s32 %s14, 1
        %s153 = sand.u32 %s27, 1
        %s154 = scalar_lea.sflag [#allocation3], %s153
        %s155 = sand.u32 %s27, 1
        %s156 = smul.addr %s155, 16
        %s157 = scalar_lea.vmem [#allocation2], %s156
        // Predicated region
        $region29: #{tpu_custom_call.1} parent=27 // pred_check
          %p158 = pneg %p40
        $region30: #{tpu_custom_call.1} parent=27 // pred_check_branch
          %160 = sbr.rel (%p158) target = $region32
        $region31: #{tpu_custom_call.1} parent=27 // pred_region
          %161 = dma.done %s154, 256
        $region32: #{tpu_custom_call.1} parent=27 // pred_fallthru
          _
        %s162 = sand.u32 %s27, 1
        %s163 = scalar_lea.sflag [#allocation3], %s162
        %s164 = sand.u32 %s27, 1
        %s165 = smul.addr %s164, 16
        %s166 = scalar_lea.vmem [#allocation2], %s165
        %p167 = pneg %p40
        %p168 = pneg %p37
        %s169 = smul.u32 8, %s19
        %p170 = scmp.lt.s32.totalorder %s169, 15
        %s171 = scalar_select %p170, %s169, 15
        %s172 = scalar_lea.vmem %s1, %s171
        %p173 = pneg %p66
        %p174 = pneg %p63
        %p175 = pneg %p92
        %p176 = pneg %p89
        %s177 = sand.u32 %s79, 1
        %s178 = scalar_lea.sflag [#allocation4], %s177
        %s179 = sand.u32 %s79, 1
        %s180 = smul.addr %s179, 16
        %s181 = scalar_lea.vmem [#allocation5], %s180
        %s182 = smul.u32 8, %s19
        %s183 = ssub.s32 12, %s182
        %p184 = scmp.lt.s32.totalorder %s183, 8
        %s185 = scalar_select %p184, %s183, 8
        %s186 = smul.u32 32, %s185
        %s187 = smul.u32 8, %s19
        %p188 = scmp.lt.s32.totalorder %s187, 15
        %s189 = scalar_select %p188, %s187, 15
        %s190 = scalar_lea.vmem %s1, %s189
        %s191 = smul.u32 8, %s19
        %s192 = smul.u32 8, %s19
        %s193 = ssub.s32 12, %s192
        %p194 = scmp.lt.s32.totalorder %s193, 8
        %s195 = scalar_select %p194, %s193, 8
        %s196 = smul.u32 32, %s195
        %v197 = vld [vmem:[%s157] sm:$0x3]
        %v198 = vld [vmem:[%s157 + $0x2] sm:$0x3]
        %v199 = vld [vmem:[%s157 + $0x4] sm:$0x3]
        %v200 = vld [vmem:[%s157 + $0x6] sm:$0x3]
        %v201 = vld [vmem:[%s157 + $0x8] sm:$0x3]
        %v202 = vld [vmem:[%s157 + $0xa] sm:$0x3]
        %v203 = vld [vmem:[%s157 + $0xc] sm:$0x3]
        %v204 = vld [vmem:[%s157 + $0xe] sm:$0x3]
        %v205 = vld [vmem:[%s190] sm:$0x1]
        %v206 = vld [vmem:[%s190 + $0x1] sm:$0x1]
        %v207 = vld [vmem:[%s190 + $0x2] sm:$0x1]
        %v208 = vld [vmem:[%s190 + $0x3] sm:$0x1]
        %v209 = vld [vmem:[%s190 + $0x4] sm:$0x1]
        %v210 = vld [vmem:[%s190 + $0x5] sm:$0x1]
        %v211 = vld [vmem:[%s190 + $0x6] sm:$0x1]
        %v212 = vld [vmem:[%s190 + $0x7] sm:$0x1]
        %v221 = vlaneseq
        %v222 = vshrl.u32 %v221, 7
        %v223 = vsub.s32 0, %v222
        %v224 = vrot.slane %v205, %v223
        %v225 = vlaneseq
        %v226 = vshrl.u32 %v225, 7
        %v227 = vsub.s32 0, %v226
        %v228 = vrot.slane %v206, %v227
        %v229 = vlaneseq
        %v230 = vshrl.u32 %v229, 7
        %v231 = vsub.s32 0, %v230
        %v232 = vrot.slane %v207, %v231
        %v233 = vlaneseq
        %v234 = vshrl.u32 %v233, 7
        %v235 = vsub.s32 0, %v234
        %v236 = vrot.slane %v208, %v235
        %v237 = vlaneseq
        %v238 = vshrl.u32 %v237, 7
        %v239 = vsub.s32 0, %v238
        %v240 = vrot.slane %v209, %v239
        %v241 = vlaneseq
        %v242 = vshrl.u32 %v241, 7
        %v243 = vsub.s32 0, %v242
        %v244 = vrot.slane %v210, %v243
        %v245 = vlaneseq
        %v246 = vshrl.u32 %v245, 7
        %v247 = vsub.s32 0, %v246
        %v248 = vrot.slane %v211, %v247
        %v249 = vlaneseq
        %v250 = vshrl.u32 %v249, 7
        %v251 = vsub.s32 0, %v250
        %v252 = vrot.slane %v212, %v251
        %v261 = vadd.f32 %v197, %v224
        %v262 = vadd.f32 %v198, %v228
        %v263 = vadd.f32 %v199, %v232
        %v264 = vadd.f32 %v200, %v236
        %v265 = vadd.f32 %v201, %v240
        %v266 = vadd.f32 %v202, %v244
        %v267 = vadd.f32 %v203, %v248
        %v268 = vadd.f32 %v204, %v252
        %269 = vst [vmem:[%s181] sm:$0x3] %v261
        %270 = vst [vmem:[%s181 + $0x2] sm:$0x3] %v262
        %271 = vst [vmem:[%s181 + $0x4] sm:$0x3] %v263
        %272 = vst [vmem:[%s181 + $0x6] sm:$0x3] %v264
        %273 = vst [vmem:[%s181 + $0x8] sm:$0x3] %v265
        %274 = vst [vmem:[%s181 + $0xa] sm:$0x3] %v266
        %275 = vst [vmem:[%s181 + $0xc] sm:$0x3] %v267
        %276 = vst [vmem:[%s181 + $0xe] sm:$0x3] %v268
        %s277 = sand.u32 %s79, 1
        %s278 = scalar_lea.sflag [#allocation4], %s277
        %s279 = sand.u32 %s79, 1
        %s280 = smul.addr %s279, 16
        %s281 = scalar_lea.vmem [#allocation5], %s280
        // Predicated region
        $region33: #{tpu_custom_call.1} parent=27 // pred_check
          %p282 = pneg %p89
        $region34: #{tpu_custom_call.1} parent=27 // pred_check_branch
          %284 = sbr.rel (%p282) target = $region36
        $region35: #{tpu_custom_call.1} parent=27 // pred_region
          %s285 = smul.u32 8, %s19
          %s286 = ssub.s32 12, %s285
          %p287 = scmp.lt.s32.totalorder %s286, 8
          %s288 = scalar_select %p287, %s286, 8
          %s289 = smul.u32 32, %s288
          %s291 = ssub.s32 256, %s289
          %292 = vsyncadd %s278, %s291
          %p293 = scmp.ne.s32.totalorder 0, %s289
          %s294 = smul.addr %s285, 32
          %s295 = scalar_lea.hbm %s2, %s294
          %s296 = smul.u32 2, %s288
          %s297 = sshll.u32 %s281, 4
          %s298 = int_to_ptr.vmem [resolvable:$true] %s297
          %s299 = sshll.u32 %s296, 4
          %303 = dma.vmem_to_hbm [thread:$0]  (%p293), %s298, %s299, %s295, %s278, 32, 32, 2
        $region36: #{tpu_custom_call.1} parent=27 // pred_fallthru
          _
      $region28: #{tpu_custom_call.1} parent=5 // pred_fallthru
        _
      %p304 = scmp.le.s32.totalorder 2, %s14
      // Predicated region
      $region37: #{tpu_custom_call.1} parent=5 // pred_check
        %p305 = pneg %p304
      $region38: #{tpu_custom_call.1} parent=5 // pred_check_branch
        %307 = sbr.rel (%p305) target = $region40
      $region39: #{tpu_custom_call.1} parent=5 // pred_region
        %s308 = ssub.s32 %s14, 2
        // Predicated region
        $region41: #{tpu_custom_call.1} parent=39 // pred_check
          %p309 = pneg %p95
        $region42: #{tpu_custom_call.1} parent=39 // pred_check_branch
          %311 = sbr.rel (%p309) target = $region44
        $region43: #{tpu_custom_call.1} parent=39 // pred_region
          %s312 = sand.u32 %s80, 1
          %s313 = scalar_lea.sflag [#allocation4], %s312
          %s314 = sand.u32 %s80, 1
          %s315 = smul.addr %s314, 16
          %s316 = scalar_lea.vmem [#allocation5], %s315
          %317 = dma.done %s313, 256
        $region44: #{tpu_custom_call.1} parent=39 // pred_fallthru
          _
      $region40: #{tpu_custom_call.1} parent=5 // pred_fallthru
        _
    $region6: #{tpu_custom_call.1} parent=1 // loop_footer
      %s18 = sadd.s32 1, %s14
    $region7: #{tpu_custom_call.1} parent=1 // loop_footer_branch
      %13 = sbr.rel target = $region3
    $region8: #{tpu_custom_call.1} parent=1 // loop_exit
      _
    %318 = vsyncpa [#allocation3], 1
    %s319 = scalar_lea.sflag [#allocation3], 1
    %320 = vsyncpa %s319, 1
    %321 = vsyncpa [#allocation4], 1
    %s322 = scalar_lea.sflag [#allocation4], 1
    %323 = vsyncpa %s322, 1

</llo_original>
